<compile_context>
chip_gen: v7x
topology: tpu7x:2x2x1
jax: 0.10.0
libtpu: 0.0.40
codegen_flags: <defaults>
</compile_context>

<pallas_src>
import numpy as np
import jax
import jax.numpy as jnp
from jax import lax
from jax.experimental import pallas as pl
from jax.experimental.pallas import tpu as pltpu


def _round_up(x, m):
    return ((x + m - 1) // m) * m


def _physical_vmem_bytes(default=64 << 20):
    """Best-effort physical VMEM query; conservative 64 MiB fallback (v7x)."""
    try:
        info = pltpu.get_tpu_info()
        return int(getattr(info, "vmem_capacity_bytes", default))
    except Exception:
        return default


def _make_esn_kernel(b_chunk, leaky_rate, compute_dtype, tanh_dtype, unroll):
    a = float(leaky_rate)
    c_out_x = 1.0 - a * a      # out = x*(1-a) + new_h*a  ==  x*(1-a^2) + h_prev*a^2
    c_out_h = a * a

    def kernel(u_ref, win_t_ref, w_t_ref, bias_ref, h0_ref, out_ref,
               uwin_scr, h_scr):
        # Initialize the persistent hidden-state scratch on the first chunk.
        @pl.when(pl.program_id(0) == 0)
        def _():
            h_scr[...] = h0_ref[...]

        # ---- hoisted input projection for this chunk (off the serial path) ----
        # One (b_chunk, Din) @ (Din, Dout) MXU matmul + bias into VMEM scratch.
        uwin_scr[...] = (
            jnp.dot(u_ref[...].astype(compute_dtype), win_t_ref[...],
                    preferred_element_type=jnp.float32)
            + bias_ref[...])

        h_init = h_scr[...]                                   # (1, Dout) f32

        # ---- sequential recurrence over the rows of this chunk ----
        # Carry both the f32 hidden state and its compute-dtype copy so the
        # cast feeding the next matmul is off the dependent chain.
        def step(b, carry):
            h_f32, h_c = carry
            x_w = jnp.dot(h_c, w_t_ref[...],
                          preferred_element_type=jnp.float32)  # (1, Dout)
            s = uwin_scr[pl.ds(b, 1), :] + x_w
            x = jnp.tanh(s.astype(tanh_dtype)).astype(jnp.float32)
            # PyTorch quirk folded: out uses the already-updated hidden.
            out_ref[pl.ds(b, 1), :] = x * c_out_x + h_f32 * c_out_h
            h_new = x * (1.0 - a) + h_f32 * a
            return h_new, h_new.astype(compute_dtype)

        h_final, _ = lax.fori_loop(
            0, b_chunk, step, (h_init, h_init.astype(compute_dtype)),
            unroll=unroll)

        # Persist the hidden state for the next chunk.
        h_scr[...] = h_final

    return kernel


def esn_forward(u, w_in, w, w_bias, hidden0, leaky_rate=0.2,
                weight_dtype=jnp.bfloat16, tanh_dtype=jnp.float32,
                b_chunk=None):
    """Pallas ESNCell forward. u:(B,Din) f32 -> (B,Dout) f32."""
    u = jnp.asarray(u, jnp.float32)
    B, Din = u.shape
    Dout = int(w.shape[0])

    # Transposed weights so each matvec is a lane-dense (1, D) @ (D, Dout).
    win_t = jnp.asarray(w_in).astype(weight_dtype).T        # (Din, Dout)
    w_t = jnp.asarray(w).astype(weight_dtype).T             # (Dout, Dout)
    bias = jnp.asarray(w_bias, jnp.float32).reshape(1, Dout)
    h0 = jnp.asarray(hidden0, jnp.float32).reshape(1, Dout)

    # B-chunk size (sublane-aligned).  Small B -> single chunk.
    if b_chunk is None:
        b_chunk = 256
    b_chunk = int(max(8, _round_up(min(b_chunk, max(B, 1)), 8)))
    B_pad = _round_up(B, b_chunk)
    if B_pad != B:
        u = jnp.pad(u, ((0, B_pad - B), (0, 0)))             # zero rows: harmless,
        # they come after all valid rows of the last chunk and are sliced off.
    num_chunks = B_pad // b_chunk

    # Unroll gated on Dout so wide reservoirs don't spill the vreg file.
    unroll = int(min(b_chunk, max(1, 2048 // max(Dout, 1))))

    kernel = _make_esn_kernel(b_chunk, leaky_rate, weight_dtype, tanh_dtype,
                              unroll)

    # VMEM budget: resident weights (allow 2x for buffering), double-buffered
    # u/out chunks, bias/h0, U_win + hidden scratch; clamp to physical VMEM.
    w_item = jnp.dtype(weight_dtype).itemsize
    needed = (2 * (win_t.size + w_t.size) * w_item
              + 2 * b_chunk * Din * 4
              + 2 * b_chunk * Dout * 4
              + 2 * (bias.size + h0.size) * 4
              + b_chunk * Dout * 4        # U_win scratch
              + Dout * 4)                 # hidden-state scratch
    phys = _physical_vmem_bytes()
    vmem_limit = int(min(phys, max(32 << 20, needed + (8 << 20))))

    out = pl.pallas_call(
        kernel,
        out_shape=jax.ShapeDtypeStruct((B_pad, Dout), jnp.float32),
        grid_spec=pltpu.PrefetchScalarGridSpec(
            num_scalar_prefetch=0,
            grid=(num_chunks,),
            in_specs=[
                pl.BlockSpec((b_chunk, Din), lambda i: (i, 0)),   # u chunk
                pl.BlockSpec((Din, Dout), lambda i: (0, 0)),      # W_in^T (resident)
                pl.BlockSpec((Dout, Dout), lambda i: (0, 0)),     # W^T (resident)
                pl.BlockSpec((1, Dout), lambda i: (0, 0)),        # bias
                pl.BlockSpec((1, Dout), lambda i: (0, 0)),        # h0
            ],
            out_specs=pl.BlockSpec((b_chunk, Dout), lambda i: (i, 0)),
            scratch_shapes=[
                pltpu.VMEM((b_chunk, Dout), jnp.float32),   # hoisted U_win
                pltpu.VMEM((1, Dout), jnp.float32),         # persistent hidden
            ]),
        compiler_params=pltpu.CompilerParams(
            dimension_semantics=("arbitrary",),
            vmem_limit_bytes=vmem_limit),
    )(u, win_t, w_t, bias, h0)
    return out[:B]


def esn_forward_ref(u, w_in, w, w_bias, hidden0, leaky_rate=0.2):
    """Plain-JAX reference mirroring the PyTorch loop exactly."""
    a = leaky_rate
    h = jnp.asarray(hidden0, jnp.float32).reshape(-1)
    bias = jnp.asarray(w_bias, jnp.float32).reshape(-1)
    outs = []
    for b in range(u.shape[0]):
        x = jnp.tanh(w_in @ u[b] + w @ h + bias)
        new_h = x * (1.0 - a) + h * a
        outs.append(x * (1.0 - a) + new_h * a)
        h = new_h
    return jnp.stack(outs)


def init_esn_params(key, input_dim, output_dim,
                    spectral_radius=0.9, bias_scaling=0.0, input_scaling=1.0):
    """Deterministic parameter init matching ESNCell.__init__ (dense, no sparsity)."""
    k_win, k_w, k_bias = jax.random.split(key, 3)
    # w_in: input_scaling * (randint{0,1} * 2 - 1)  -> entries in {-1, +1}
    w_in = input_scaling * (
        jax.random.randint(k_win, (output_dim, input_dim), 0, 2).astype(jnp.float32)
        * 2.0 - 1.0)
    # w: uniform(-1, 1) rescaled to the target spectral radius
    w_raw = jax.random.uniform(k_w, (output_dim, output_dim), jnp.float32) * 2.0 - 1.0
    sr = float(np.max(np.abs(np.linalg.eigvals(np.asarray(w_raw, np.float64)))))
    w = w_raw * (spectral_radius / sr)
    # w_bias: bias_scaling * uniform(-1, 1), shape (1, output_dim)  (zeros by default)
    w_bias = bias_scaling * (
        jax.random.uniform(k_bias, (1, output_dim), jnp.float32) * 2.0 - 1.0)
    hidden0 = jnp.zeros((output_dim,), jnp.float32)
    return w_in, w, w_bias, hidden0


if __name__ == "__main__":
    input_dim = 16
    output_dim = 128     # reservoir size
    leaky_rate = 0.2

    key = jax.random.PRNGKey(0)
    k_params, k_u1, k_u2 = jax.random.split(key, 3)
    w_in, w, w_bias, hidden0 = init_esn_params(k_params, input_dim, output_dim)

    # --- single-chunk path (B=8) ---
    u = jax.random.normal(k_u1, (8, input_dim), jnp.float32)
    ref = esn_forward_ref(u, w_in, w, w_bias, hidden0, leaky_rate)

    out_f32 = jax.block_until_ready(
        esn_forward(u, w_in, w, w_bias, hidden0, leaky_rate,
                    weight_dtype=jnp.float32))
    np.testing.assert_allclose(np.asarray(out_f32), np.asarray(ref),
                               rtol=1e-4, atol=1e-4)

    out_bf16 = jax.block_until_ready(
        esn_forward(u, w_in, w, w_bias, hidden0, leaky_rate))
    np.testing.assert_allclose(np.asarray(out_bf16), np.asarray(ref),
                               rtol=5e-2, atol=5e-2)

    # --- multi-chunk path (grid over B with carried hidden state, ragged B) ---
    u2 = jax.random.normal(k_u2, (20, input_dim), jnp.float32)
    ref2 = esn_forward_ref(u2, w_in, w, w_bias, hidden0, leaky_rate)
    out2 = jax.block_until_ready(
        esn_forward(u2, w_in, w, w_bias, hidden0, leaky_rate,
                    weight_dtype=jnp.float32, b_chunk=8))
    np.testing.assert_allclose(np.asarray(out2), np.asarray(ref2),
                               rtol=1e-4, atol=1e-4)

    print("KERNEL_OK")
</pallas_src>

<mosaic_0001>
module attributes {stable_mosaic.version = 11 : i64} {
  func.func @kernel(%arg0: i32, %arg1: memref<8x16xf32, #tpu.memory_space<vmem>>, %arg2: memref<16x128xf32, #tpu.memory_space<vmem>>, %arg3: memref<128x128xf32, #tpu.memory_space<vmem>>, %arg4: memref<1x128xf32, #tpu.memory_space<vmem>>, %arg5: memref<1x128xf32, #tpu.memory_space<vmem>>, %arg6: memref<8x128xf32, #tpu.memory_space<vmem>>, %arg7: memref<8x128xf32, #tpu.memory_space<vmem>>, %arg8: memref<1x128xf32, #tpu.memory_space<vmem>>) attributes {dimension_semantics = [#tpu.dimension_semantics<arbitrary>], iteration_bounds = array<i64: 1>, scalar_prefetch = 0 : i64, scratch_operands = 2 : i64, tpu.core_type = #tpu.core_type<tc>, window_params = [{transform_indices = @transform_0, window_bounds = array<i64: 8, 16>}, {pipeline_mode = #tpu.pipeline_mode<synchronous>, transform_indices = @transform_1, window_bounds = array<i64: 16, 128>}, {pipeline_mode = #tpu.pipeline_mode<synchronous>, transform_indices = @transform_2, window_bounds = array<i64: 128, 128>}, {pipeline_mode = #tpu.pipeline_mode<synchronous>, transform_indices = @transform_3, window_bounds = array<i64: 1, 128>}, {pipeline_mode = #tpu.pipeline_mode<synchronous>, transform_indices = @transform_4, window_bounds = array<i64: 1, 128>}, {transform_indices = @transform_5, window_bounds = array<i64: 8, 128>}]} {
    %c0_i32 = arith.constant 0 : i32
    %0 = arith.cmpi eq, %arg0, %c0_i32 : i32
    %1 = arith.extui %0 : i1 to i32
    %c0_i32_0 = arith.constant 0 : i32
    %2 = arith.cmpi ne, %1, %c0_i32_0 : i32
    scf.if %2 {
      %c0_85 = arith.constant 0 : index
      %c0_86 = arith.constant 0 : index
      %156 = vector.load %arg5[%c0_85, %c0_86] : memref<1x128xf32, #tpu.memory_space<vmem>>, vector<1x128xf32>
      %c0_87 = arith.constant 0 : index
      %c0_88 = arith.constant 0 : index
      %157 = vector.load %arg8[%c0_87, %c0_88] : memref<1x128xf32, #tpu.memory_space<vmem>>, vector<1x128xf32>
      tpu.vector_store %arg8[%c0_87, %c0_88], %156 {strides = array<i32>} : memref<1x128xf32, #tpu.memory_space<vmem>>, vector<1x128xf32>,
    } else {
    }
    %c0 = arith.constant 0 : index
    %c0_1 = arith.constant 0 : index
    %3 = vector.load %arg1[%c0, %c0_1] : memref<8x16xf32, #tpu.memory_space<vmem>>, vector<8x16xf32>
    %c0_2 = arith.constant 0 : index
    %c0_3 = arith.constant 0 : index
    %4 = vector.load %arg2[%c0_2, %c0_3] : memref<16x128xf32, #tpu.memory_space<vmem>>, vector<16x128xf32>
    %cst = arith.constant dense<0.000000e+00> : vector<8x128xf32>
    %5 = tpu.matmul %3, %4, %cst {dimension_numbers = #tpu.dot_dimension_numbers<[1], [0], [0], [1], [0, 0, 1, 1], [], []>} : vector<8x16xf32>, vector<16x128xf32>, vector<8x128xf32> -> vector<8x128xf32>
    %c0_4 = arith.constant 0 : index
    %c0_5 = arith.constant 0 : index
    %6 = vector.load %arg4[%c0_4, %c0_5] : memref<1x128xf32, #tpu.memory_space<vmem>>, vector<1x128xf32>
    %7 = vector.broadcast %6 : vector<1x128xf32> to vector<8x128xf32>
    %8 = arith.addf %5, %7 : vector<8x128xf32>
    %c0_6 = arith.constant 0 : index
    %c0_7 = arith.constant 0 : index
    %9 = vector.load %arg7[%c0_6, %c0_7] : memref<8x128xf32, #tpu.memory_space<vmem>>, vector<8x128xf32>
    tpu.vector_store %arg7[%c0_6, %c0_7], %8 {strides = array<i32>} : memref<8x128xf32, #tpu.memory_space<vmem>>, vector<8x128xf32>,
    %c0_8 = arith.constant 0 : index
    %c0_9 = arith.constant 0 : index
    %10 = vector.load %arg8[%c0_8, %c0_9] : memref<1x128xf32, #tpu.memory_space<vmem>>, vector<1x128xf32>
    %c0_i32_10 = arith.constant 0 : i32
    %c0_11 = arith.constant 0 : index
    %c0_12 = arith.constant 0 : index
    %11 = vector.load %arg3[%c0_11, %c0_12] : memref<128x128xf32, #tpu.memory_space<vmem>>, vector<128x128xf32>
    %cst_13 = arith.constant dense<0.000000e+00> : vector<1x128xf32>
    %12 = tpu.matmul %10, %11, %cst_13 {dimension_numbers = #tpu.dot_dimension_numbers<[1], [0], [0], [1], [0, 0, 1, 1], [], []>} : vector<1x128xf32>, vector<128x128xf32>, vector<1x128xf32> -> vector<1x128xf32>
    %13 = arith.index_cast %c0_i32_10 : i32 to index
    %c0_14 = arith.constant 0 : index
    %14 = vector.load %arg7[%13, %c0_14] : memref<8x128xf32, #tpu.memory_space<vmem>>, vector<1x128xf32>
    %15 = arith.addf %14, %12 : vector<1x128xf32>
    %16 = math.tanh %15 : vector<1x128xf32>
    %cst_15 = arith.constant 0.959999978 : f32
    %17 = vector.broadcast %cst_15 : f32 to vector<1x128xf32>
    %18 = arith.mulf %16, %17 : vector<1x128xf32>
    %cst_16 = arith.constant 4.000000e-02 : f32
    %19 = vector.broadcast %cst_16 : f32 to vector<1x128xf32>
    %20 = arith.mulf %10, %19 : vector<1x128xf32>
    %21 = arith.addf %18, %20 : vector<1x128xf32>
    %22 = arith.index_cast %c0_i32_10 : i32 to index
    %c0_17 = arith.constant 0 : index
    %23 = vector.load %arg6[%22, %c0_17] : memref<8x128xf32, #tpu.memory_space<vmem>>, vector<1x128xf32>
    tpu.vector_store %arg6[%22, %c0_17], %21 {strides = array<i32>} : memref<8x128xf32, #tpu.memory_space<vmem>>, vector<1x128xf32>,
    %cst_18 = arith.constant 8.000000e-01 : f32
    %24 = vector.broadcast %cst_18 : f32 to vector<1x128xf32>
    %25 = arith.mulf %16, %24 : vector<1x128xf32>
    %cst_19 = arith.constant 2.000000e-01 : f32
    %26 = vector.broadcast %cst_19 : f32 to vector<1x128xf32>
    %27 = arith.mulf %10, %26 : vector<1x128xf32>
    %28 = arith.addf %25, %27 : vector<1x128xf32>
    %c1_i32 = arith.constant 1 : i32
    %c0_20 = arith.constant 0 : index
    %c0_21 = arith.constant 0 : index
    %29 = vector.load %arg3[%c0_20, %c0_21] : memref<128x128xf32, #tpu.memory_space<vmem>>, vector<128x128xf32>
    %cst_22 = arith.constant dense<0.000000e+00> : vector<1x128xf32>
    %30 = tpu.matmul %28, %29, %cst_22 {dimension_numbers = #tpu.dot_dimension_numbers<[1], [0], [0], [1], [0, 0, 1, 1], [], []>} : vector<1x128xf32>, vector<128x128xf32>, vector<1x128xf32> -> vector<1x128xf32>
    %31 = arith.index_cast %c1_i32 : i32 to index
    %c0_23 = arith.constant 0 : index
    %32 = vector.load %arg7[%31, %c0_23] : memref<8x128xf32, #tpu.memory_space<vmem>>, vector<1x128xf32>
    %33 = arith.addf %32, %30 : vector<1x128xf32>
    %34 = math.tanh %33 : vector<1x128xf32>
    %cst_24 = arith.constant 0.959999978 : f32
    %35 = vector.broadcast %cst_24 : f32 to vector<1x128xf32>
    %36 = arith.mulf %34, %35 : vector<1x128xf32>
    %cst_25 = arith.constant 4.000000e-02 : f32
    %37 = vector.broadcast %cst_25 : f32 to vector<1x128xf32>
    %38 = arith.mulf %28, %37 : vector<1x128xf32>
    %39 = arith.addf %36, %38 : vector<1x128xf32>
    %40 = arith.index_cast %c1_i32 : i32 to index
    %c0_26 = arith.constant 0 : index
    %41 = vector.load %arg6[%40, %c0_26] : memref<8x128xf32, #tpu.memory_space<vmem>>, vector<1x128xf32>
    tpu.vector_store %arg6[%40, %c0_26], %39 {strides = array<i32>} : memref<8x128xf32, #tpu.memory_space<vmem>>, vector<1x128xf32>,
    %cst_27 = arith.constant 8.000000e-01 : f32
    %42 = vector.broadcast %cst_27 : f32 to vector<1x128xf32>
    %43 = arith.mulf %34, %42 : vector<1x128xf32>
    %cst_28 = arith.constant 2.000000e-01 : f32
    %44 = vector.broadcast %cst_28 : f32 to vector<1x128xf32>
    %45 = arith.mulf %28, %44 : vector<1x128xf32>
    %46 = arith.addf %43, %45 : vector<1x128xf32>
    %c2_i32 = arith.constant 2 : i32
    %c0_29 = arith.constant 0 : index
    %c0_30 = arith.constant 0 : index
    %47 = vector.load %arg3[%c0_29, %c0_30] : memref<128x128xf32, #tpu.memory_space<vmem>>, vector<128x128xf32>
    %cst_31 = arith.constant dense<0.000000e+00> : vector<1x128xf32>
    %48 = tpu.matmul %46, %47, %cst_31 {dimension_numbers = #tpu.dot_dimension_numbers<[1], [0], [0], [1], [0, 0, 1, 1], [], []>} : vector<1x128xf32>, vector<128x128xf32>, vector<1x128xf32> -> vector<1x128xf32>
    %49 = arith.index_cast %c2_i32 : i32 to index
    %c0_32 = arith.constant 0 : index
    %50 = vector.load %arg7[%49, %c0_32] : memref<8x128xf32, #tpu.memory_space<vmem>>, vector<1x128xf32>
    %51 = arith.addf %50, %48 : vector<1x128xf32>
    %52 = math.tanh %51 : vector<1x128xf32>
    %cst_33 = arith.constant 0.959999978 : f32
    %53 = vector.broadcast %cst_33 : f32 to vector<1x128xf32>
    %54 = arith.mulf %52, %53 : vector<1x128xf32>
    %cst_34 = arith.constant 4.000000e-02 : f32
    %55 = vector.broadcast %cst_34 : f32 to vector<1x128xf32>
    %56 = arith.mulf %46, %55 : vector<1x128xf32>
    %57 = arith.addf %54, %56 : vector<1x128xf32>
    %58 = arith.index_cast %c2_i32 : i32 to index
    %c0_35 = arith.constant 0 : index
    %59 = vector.load %arg6[%58, %c0_35] : memref<8x128xf32, #tpu.memory_space<vmem>>, vector<1x128xf32>
    tpu.vector_store %arg6[%58, %c0_35], %57 {strides = array<i32>} : memref<8x128xf32, #tpu.memory_space<vmem>>, vector<1x128xf32>,
    %cst_36 = arith.constant 8.000000e-01 : f32
    %60 = vector.broadcast %cst_36 : f32 to vector<1x128xf32>
    %61 = arith.mulf %52, %60 : vector<1x128xf32>
    %cst_37 = arith.constant 2.000000e-01 : f32
    %62 = vector.broadcast %cst_37 : f32 to vector<1x128xf32>
    %63 = arith.mulf %46, %62 : vector<1x128xf32>
    %64 = arith.addf %61, %63 : vector<1x128xf32>
    %c3_i32 = arith.constant 3 : i32
    %c0_38 = arith.constant 0 : index
    %c0_39 = arith.constant 0 : index
    %65 = vector.load %arg3[%c0_38, %c0_39] : memref<128x128xf32, #tpu.memory_space<vmem>>, vector<128x128xf32>
    %cst_40 = arith.constant dense<0.000000e+00> : vector<1x128xf32>
    %66 = tpu.matmul %64, %65, %cst_40 {dimension_numbers = #tpu.dot_dimension_numbers<[1], [0], [0], [1], [0, 0, 1, 1], [], []>} : vector<1x128xf32>, vector<128x128xf32>, vector<1x128xf32> -> vector<1x128xf32>
    %67 = arith.index_cast %c3_i32 : i32 to index
    %c0_41 = arith.constant 0 : index
    %68 = vector.load %arg7[%67, %c0_41] : memref<8x128xf32, #tpu.memory_space<vmem>>, vector<1x128xf32>
    %69 = arith.addf %68, %66 : vector<1x128xf32>
    %70 = math.tanh %69 : vector<1x128xf32>
    %cst_42 = arith.constant 0.959999978 : f32
    %71 = vector.broadcast %cst_42 : f32 to vector<1x128xf32>
    %72 = arith.mulf %70, %71 : vector<1x128xf32>
    %cst_43 = arith.constant 4.000000e-02 : f32
    %73 = vector.broadcast %cst_43 : f32 to vector<1x128xf32>
    %74 = arith.mulf %64, %73 : vector<1x128xf32>
    %75 = arith.addf %72, %74 : vector<1x128xf32>
    %76 = arith.index_cast %c3_i32 : i32 to index
    %c0_44 = arith.constant 0 : index
    %77 = vector.load %arg6[%76, %c0_44] : memref<8x128xf32, #tpu.memory_space<vmem>>, vector<1x128xf32>
    tpu.vector_store %arg6[%76, %c0_44], %75 {strides = array<i32>} : memref<8x128xf32, #tpu.memory_space<vmem>>, vector<1x128xf32>,
    %cst_45 = arith.constant 8.000000e-01 : f32
    %78 = vector.broadcast %cst_45 : f32 to vector<1x128xf32>
    %79 = arith.mulf %70, %78 : vector<1x128xf32>
    %cst_46 = arith.constant 2.000000e-01 : f32
    %80 = vector.broadcast %cst_46 : f32 to vector<1x128xf32>
    %81 = arith.mulf %64, %80 : vector<1x128xf32>
    %82 = arith.addf %79, %81 : vector<1x128xf32>
    %c4_i32 = arith.constant 4 : i32
    %c0_47 = arith.constant 0 : index
    %c0_48 = arith.constant 0 : index
    %83 = vector.load %arg3[%c0_47, %c0_48] : memref<128x128xf32, #tpu.memory_space<vmem>>, vector<128x128xf32>
    %cst_49 = arith.constant dense<0.000000e+00> : vector<1x128xf32>
    %84 = tpu.matmul %82, %83, %cst_49 {dimension_numbers = #tpu.dot_dimension_numbers<[1], [0], [0], [1], [0, 0, 1, 1], [], []>} : vector<1x128xf32>, vector<128x128xf32>, vector<1x128xf32> -> vector<1x128xf32>
    %85 = arith.index_cast %c4_i32 : i32 to index
    %c0_50 = arith.constant 0 : index
    %86 = vector.load %arg7[%85, %c0_50] : memref<8x128xf32, #tpu.memory_space<vmem>>, vector<1x128xf32>
    %87 = arith.addf %86, %84 : vector<1x128xf32>
    %88 = math.tanh %87 : vector<1x128xf32>
    %cst_51 = arith.constant 0.959999978 : f32
    %89 = vector.broadcast %cst_51 : f32 to vector<1x128xf32>
    %90 = arith.mulf %88, %89 : vector<1x128xf32>
    %cst_52 = arith.constant 4.000000e-02 : f32
    %91 = vector.broadcast %cst_52 : f32 to vector<1x128xf32>
    %92 = arith.mulf %82, %91 : vector<1x128xf32>
    %93 = arith.addf %90, %92 : vector<1x128xf32>
    %94 = arith.index_cast %c4_i32 : i32 to index
    %c0_53 = arith.constant 0 : index
    %95 = vector.load %arg6[%94, %c0_53] : memref<8x128xf32, #tpu.memory_space<vmem>>, vector<1x128xf32>
    tpu.vector_store %arg6[%94, %c0_53], %93 {strides = array<i32>} : memref<8x128xf32, #tpu.memory_space<vmem>>, vector<1x128xf32>,
    %cst_54 = arith.constant 8.000000e-01 : f32
    %96 = vector.broadcast %cst_54 : f32 to vector<1x128xf32>
    %97 = arith.mulf %88, %96 : vector<1x128xf32>
    %cst_55 = arith.constant 2.000000e-01 : f32
    %98 = vector.broadcast %cst_55 : f32 to vector<1x128xf32>
    %99 = arith.mulf %82, %98 : vector<1x128xf32>
    %100 = arith.addf %97, %99 : vector<1x128xf32>
    %c5_i32 = arith.constant 5 : i32
    %c0_56 = arith.constant 0 : index
    %c0_57 = arith.constant 0 : index
    %101 = vector.load %arg3[%c0_56, %c0_57] : memref<128x128xf32, #tpu.memory_space<vmem>>, vector<128x128xf32>
    %cst_58 = arith.constant dense<0.000000e+00> : vector<1x128xf32>
    %102 = tpu.matmul %100, %101, %cst_58 {dimension_numbers = #tpu.dot_dimension_numbers<[1], [0], [0], [1], [0, 0, 1, 1], [], []>} : vector<1x128xf32>, vector<128x128xf32>, vector<1x128xf32> -> vector<1x128xf32>
    %103 = arith.index_cast %c5_i32 : i32 to index
    %c0_59 = arith.constant 0 : index
    %104 = vector.load %arg7[%103, %c0_59] : memref<8x128xf32, #tpu.memory_space<vmem>>, vector<1x128xf32>
    %105 = arith.addf %104, %102 : vector<1x128xf32>
    %106 = math.tanh %105 : vector<1x128xf32>
    %cst_60 = arith.constant 0.959999978 : f32
    %107 = vector.broadcast %cst_60 : f32 to vector<1x128xf32>
    %108 = arith.mulf %106, %107 : vector<1x128xf32>
    %cst_61 = arith.constant 4.000000e-02 : f32
    %109 = vector.broadcast %cst_61 : f32 to vector<1x128xf32>
    %110 = arith.mulf %100, %109 : vector<1x128xf32>
    %111 = arith.addf %108, %110 : vector<1x128xf32>
    %112 = arith.index_cast %c5_i32 : i32 to index
    %c0_62 = arith.constant 0 : index
    %113 = vector.load %arg6[%112, %c0_62] : memref<8x128xf32, #tpu.memory_space<vmem>>, vector<1x128xf32>
    tpu.vector_store %arg6[%112, %c0_62], %111 {strides = array<i32>} : memref<8x128xf32, #tpu.memory_space<vmem>>, vector<1x128xf32>,
    %cst_63 = arith.constant 8.000000e-01 : f32
    %114 = vector.broadcast %cst_63 : f32 to vector<1x128xf32>
    %115 = arith.mulf %106, %114 : vector<1x128xf32>
    %cst_64 = arith.constant 2.000000e-01 : f32
    %116 = vector.broadcast %cst_64 : f32 to vector<1x128xf32>
    %117 = arith.mulf %100, %116 : vector<1x128xf32>
    %118 = arith.addf %115, %117 : vector<1x128xf32>
    %c6_i32 = arith.constant 6 : i32
    %c0_65 = arith.constant 0 : index
    %c0_66 = arith.constant 0 : index
    %119 = vector.load %arg3[%c0_65, %c0_66] : memref<128x128xf32, #tpu.memory_space<vmem>>, vector<128x128xf32>
    %cst_67 = arith.constant dense<0.000000e+00> : vector<1x128xf32>
    %120 = tpu.matmul %118, %119, %cst_67 {dimension_numbers = #tpu.dot_dimension_numbers<[1], [0], [0], [1], [0, 0, 1, 1], [], []>} : vector<1x128xf32>, vector<128x128xf32>, vector<1x128xf32> -> vector<1x128xf32>
    %121 = arith.index_cast %c6_i32 : i32 to index
    %c0_68 = arith.constant 0 : index
    %122 = vector.load %arg7[%121, %c0_68] : memref<8x128xf32, #tpu.memory_space<vmem>>, vector<1x128xf32>
    %123 = arith.addf %122, %120 : vector<1x128xf32>
    %124 = math.tanh %123 : vector<1x128xf32>
    %cst_69 = arith.constant 0.959999978 : f32
    %125 = vector.broadcast %cst_69 : f32 to vector<1x128xf32>
    %126 = arith.mulf %124, %125 : vector<1x128xf32>
    %cst_70 = arith.constant 4.000000e-02 : f32
    %127 = vector.broadcast %cst_70 : f32 to vector<1x128xf32>
    %128 = arith.mulf %118, %127 : vector<1x128xf32>
    %129 = arith.addf %126, %128 : vector<1x128xf32>
    %130 = arith.index_cast %c6_i32 : i32 to index
    %c0_71 = arith.constant 0 : index
    %131 = vector.load %arg6[%130, %c0_71] : memref<8x128xf32, #tpu.memory_space<vmem>>, vector<1x128xf32>
    tpu.vector_store %arg6[%130, %c0_71], %129 {strides = array<i32>} : memref<8x128xf32, #tpu.memory_space<vmem>>, vector<1x128xf32>,
    %cst_72 = arith.constant 8.000000e-01 : f32
    %132 = vector.broadcast %cst_72 : f32 to vector<1x128xf32>
    %133 = arith.mulf %124, %132 : vector<1x128xf32>
    %cst_73 = arith.constant 2.000000e-01 : f32
    %134 = vector.broadcast %cst_73 : f32 to vector<1x128xf32>
    %135 = arith.mulf %118, %134 : vector<1x128xf32>
    %136 = arith.addf %133, %135 : vector<1x128xf32>
    %c7_i32 = arith.constant 7 : i32
    %c0_74 = arith.constant 0 : index
    %c0_75 = arith.constant 0 : index
    %137 = vector.load %arg3[%c0_74, %c0_75] : memref<128x128xf32, #tpu.memory_space<vmem>>, vector<128x128xf32>
    %cst_76 = arith.constant dense<0.000000e+00> : vector<1x128xf32>
    %138 = tpu.matmul %136, %137, %cst_76 {dimension_numbers = #tpu.dot_dimension_numbers<[1], [0], [0], [1], [0, 0, 1, 1], [], []>} : vector<1x128xf32>, vector<128x128xf32>, vector<1x128xf32> -> vector<1x128xf32>
    %139 = arith.index_cast %c7_i32 : i32 to index
    %c0_77 = arith.constant 0 : index
    %140 = vector.load %arg7[%139, %c0_77] : memref<8x128xf32, #tpu.memory_space<vmem>>, vector<1x128xf32>
    %141 = arith.addf %140, %138 : vector<1x128xf32>
    %142 = math.tanh %141 : vector<1x128xf32>
    %cst_78 = arith.constant 0.959999978 : f32
    %143 = vector.broadcast %cst_78 : f32 to vector<1x128xf32>
    %144 = arith.mulf %142, %143 : vector<1x128xf32>
    %cst_79 = arith.constant 4.000000e-02 : f32
    %145 = vector.broadcast %cst_79 : f32 to vector<1x128xf32>
    %146 = arith.mulf %136, %145 : vector<1x128xf32>
    %147 = arith.addf %144, %146 : vector<1x128xf32>
    %148 = arith.index_cast %c7_i32 : i32 to index
    %c0_80 = arith.constant 0 : index
    %149 = vector.load %arg6[%148, %c0_80] : memref<8x128xf32, #tpu.memory_space<vmem>>, vector<1x128xf32>
    tpu.vector_store %arg6[%148, %c0_80], %147 {strides = array<i32>} : memref<8x128xf32, #tpu.memory_space<vmem>>, vector<1x128xf32>,
    %cst_81 = arith.constant 8.000000e-01 : f32
    %150 = vector.broadcast %cst_81 : f32 to vector<1x128xf32>
    %151 = arith.mulf %142, %150 : vector<1x128xf32>
    %cst_82 = arith.constant 2.000000e-01 : f32
    %152 = vector.broadcast %cst_82 : f32 to vector<1x128xf32>
    %153 = arith.mulf %136, %152 : vector<1x128xf32>
    %154 = arith.addf %151, %153 : vector<1x128xf32>
    %c8_i32 = arith.constant 8 : i32
    %c0_83 = arith.constant 0 : index
    %c0_84 = arith.constant 0 : index
    %155 = vector.load %arg8[%c0_83, %c0_84] : memref<1x128xf32, #tpu.memory_space<vmem>>, vector<1x128xf32>
    tpu.vector_store %arg8[%c0_83, %c0_84], %154 {strides = array<i32>} : memref<1x128xf32, #tpu.memory_space<vmem>>, vector<1x128xf32>,
    return
  }
  func.func @transform_0(%arg0: i32) -> (i32, i32) {
    %c0_i32 = arith.constant 0 : i32
    %c0_i32_0 = arith.constant 0 : i32
    return %arg0, %c0_i32 : i32, i32
  }
  func.func @transform_1(%arg0: i32) -> (i32, i32) {
    %c0_i32 = arith.constant 0 : i32
    %c0_i32_0 = arith.constant 0 : i32
    %c0_i32_1 = arith.constant 0 : i32
    return %c0_i32, %c0_i32_0 : i32, i32
  }
  func.func @transform_2(%arg0: i32) -> (i32, i32) {
    %c0_i32 = arith.constant 0 : i32
    %c0_i32_0 = arith.constant 0 : i32
    %c0_i32_1 = arith.constant 0 : i32
    return %c0_i32, %c0_i32_0 : i32, i32
  }
  func.func @transform_3(%arg0: i32) -> (i32, i32) {
    %c0_i32 = arith.constant 0 : i32
    %c0_i32_0 = arith.constant 0 : i32
    %c0_i32_1 = arith.constant 0 : i32
    return %c0_i32, %c0_i32_0 : i32, i32
  }
  func.func @transform_4(%arg0: i32) -> (i32, i32) {
    %c0_i32 = arith.constant 0 : i32
    %c0_i32_0 = arith.constant 0 : i32
    %c0_i32_1 = arith.constant 0 : i32
    return %c0_i32, %c0_i32_0 : i32, i32
  }
  func.func @transform_5(%arg0: i32) -> (i32, i32) {
    %c0_i32 = arith.constant 0 : i32
    %c0_i32_0 = arith.constant 0 : i32
    return %arg0, %c0_i32 : i32, i32
  }
}

</mosaic_0001>

<llo_original>
// kernel: tpu_custom_call.1
$region0: #{tpu_custom_call.1}
  #allocation0 [shape = 'u32[]', space=smem, size = 0x4, offset = 0x4, fixed_abs, tag = 'smem constant byte address 0x4 - core index']
  #allocation1 [shape = 'u32[144,128]{1,0:T(1,128)}', space=vmem, size = 0x12000, scoped, tag = 'internal scratch']
  #allocation2 [shape = 'f32[8,128]{1,0:T(8,128)}', space=vmem, size = 0x1000, scoped, tag = 'scratch operand']
  #allocation3 [shape = 'f32[1,128]{1,0:T(1,128)}', space=vmem, size = 0x200, scoped, tag = 'scratch operand']
  %s0 = inlined_call_operand.hbm [shape: f32[8,16], index: 0, kind: input, shape index: {}]
  %s1 = inlined_call_operand.hbm [shape: f32[16,128], index: 1, kind: input, shape index: {}]
  %s2 = inlined_call_operand.hbm [shape: f32[128,128], index: 2, kind: input, shape index: {}]
  %s3 = inlined_call_operand.vmem [shape: f32[1,128], index: 3, kind: input, shape index: {}]
  %s4 = inlined_call_operand.vmem [shape: f32[1,128], index: 4, kind: input, shape index: {}]
  %s5 = inlined_call_operand.hbm [shape: f32[8,128], index: 5, kind: output, shape index: {}]
  %s6 = sld [smem:[#allocation0]]
  $region46: #{tpu_custom_call.1} parent=0
    _
  %s8 = ssub.s32 1, %s6
  %s9 = scalar_select 0, %s8, %s6
  $region1: #{tpu_custom_call.1} parent=0
    #allocation4 [shape = 'u8[4096]{0}', space=vmem, size = 0x1000, scoped, tag = 'input window, operand 0, single buffered']
    #allocation5 [shape = 's32[1]{0}', space=sflag, size = 0x4, scoped, tag = 'scoped memory for tpu_custom_call.1']
    #allocation6 [shape = 's32[1]{0}', space=sflag, size = 0x4, scoped, tag = 'scoped memory for tpu_custom_call.1']
    #allocation7 [shape = 'u8[8192]{0}', space=vmem, size = 0x2000, scoped, tag = 'input window, operand 1, single buffered']
    #allocation8 [shape = 's32[1]{0}', space=sflag, size = 0x4, scoped, tag = 'scoped memory for tpu_custom_call.1']
    #allocation9 [shape = 'u8[65536]{0}', space=vmem, size = 0x10000, scoped, tag = 'input window, operand 2, single buffered']
    #allocation10 [shape = 'u8[4096]{0}', space=vmem, size = 0x1000, scoped, tag = 'output window, operand 0, single buffered']
    %10 = vsyncpa [#allocation5], 0
    %11 = vsyncpa [#allocation8], 0
    %12 = vsyncpa [#allocation6], 0
    // Predicated region
    $region2: #{tpu_custom_call.1} parent=1 // pred_check
      _
    $region3: #{tpu_custom_call.1} parent=1 // pred_check_branch
      %14 = sbr.rel (0) target = $region5
    $region4: #{tpu_custom_call.1} parent=1 // pred_region
      %s16 = ssub.s32 128, 128
      %17 = vsyncadd [#allocation5], %s16
      %s19 = sshll.u32 [#allocation4], 4
      %s20 = int_to_ptr.vmem [resolvable:$true] %s19
      %22 = dma.hbm_to_vmem [thread:$0]  %s0, 128, %s20, [#allocation5]
    $region5: #{tpu_custom_call.1} parent=1 // pred_fallthru
      _
    // Predicated region
    $region6: #{tpu_custom_call.1} parent=1 // pred_check
      _
    $region7: #{tpu_custom_call.1} parent=1 // pred_check_branch
      %24 = sbr.rel (0) target = $region9
    $region8: #{tpu_custom_call.1} parent=1 // pred_region
      %s26 = ssub.s32 256, 256
      %27 = vsyncadd [#allocation8], %s26
      %s28 = sshll.u32 [#allocation7], 4
      %s29 = int_to_ptr.vmem [resolvable:$true] %s28
      %34 = dma.hbm_to_vmem [thread:$0]  %s1, 256, %s29, [#allocation8], 128, 128, 8
    $region9: #{tpu_custom_call.1} parent=1 // pred_fallthru
      _
    // Predicated region
    $region10: #{tpu_custom_call.1} parent=1 // pred_check
      _
    $region11: #{tpu_custom_call.1} parent=1 // pred_check_branch
      %36 = sbr.rel (0) target = $region13
    $region12: #{tpu_custom_call.1} parent=1 // pred_region
      %s38 = ssub.s32 2048, 2048
      %39 = vsyncadd [#allocation8], %s38
      %s40 = sshll.u32 [#allocation9], 4
      %s41 = int_to_ptr.vmem [resolvable:$true] %s40
      %46 = dma.hbm_to_vmem [thread:$0]  %s2, 2048, %s41, [#allocation8], 128, 128, 8
    $region13: #{tpu_custom_call.1} parent=1 // pred_fallthru
      _
    // Predicated region
    $region14: #{tpu_custom_call.1} parent=1 // pred_check
      _
    $region15: #{tpu_custom_call.1} parent=1 // pred_check_branch
      %48 = sbr.rel (0) target = $region17
    $region16: #{tpu_custom_call.1} parent=1 // pred_region
      _
    $region17: #{tpu_custom_call.1} parent=1 // pred_fallthru
      _
    // Predicated region
    $region18: #{tpu_custom_call.1} parent=1 // pred_check
      _
    $region19: #{tpu_custom_call.1} parent=1 // pred_check_branch
      %50 = sbr.rel (0) target = $region21
    $region20: #{tpu_custom_call.1} parent=1 // pred_region
      _
    $region21: #{tpu_custom_call.1} parent=1 // pred_fallthru
      _
    // Predicated region
    $region22: #{tpu_custom_call.1} parent=1 // pred_check
      _
    $region23: #{tpu_custom_call.1} parent=1 // pred_check_branch
      %52 = sbr.rel (0) target = $region25
    $region24: #{tpu_custom_call.1} parent=1 // pred_region
      %53 = dma.done [#allocation5], 128
    $region25: #{tpu_custom_call.1} parent=1 // pred_fallthru
      _
    // Predicated region
    $region26: #{tpu_custom_call.1} parent=1 // pred_check
      _
    $region27: #{tpu_custom_call.1} parent=1 // pred_check_branch
      %55 = sbr.rel (0) target = $region29
    $region28: #{tpu_custom_call.1} parent=1 // pred_region
      %56 = dma.done [#allocation8], 256
    $region29: #{tpu_custom_call.1} parent=1 // pred_fallthru
      _
    // Predicated region
    $region30: #{tpu_custom_call.1} parent=1 // pred_check
      _
    $region31: #{tpu_custom_call.1} parent=1 // pred_check_branch
      %58 = sbr.rel (0) target = $region33
    $region32: #{tpu_custom_call.1} parent=1 // pred_region
      %59 = dma.done [#allocation8], 2048
    $region33: #{tpu_custom_call.1} parent=1 // pred_fallthru
      _
    %p60 = scmp.eq.s32.totalorder 0, 0
    // Predicated region
    $region34: #{tpu_custom_call.1} parent=1 // pred_check
      %p61 = pneg %p60
    $region35: #{tpu_custom_call.1} parent=1 // pred_check_branch
      %63 = sbr.rel (%p61) target = $region37
    $region36: #{tpu_custom_call.1} parent=1 // pred_region
      %v64 = vld [vmem:[%s4] sm:$0x1]
      %65 = vst [vmem:[#allocation3] sm:$0x1] %v64
    $region37: #{tpu_custom_call.1} parent=1 // pred_fallthru
      _
    %v66 = vld [vmem:[#allocation4] sm:$0xff]
    %v67 = vld [vmem:[#allocation7] sm:$0xff]
    %v68 = vld [vmem:[#allocation7 + $0x8] sm:$0xff]
    %v69 = vld [vmem:[%s3] sm:$0x1]
    %v71 = vlaneseq
    %v72 = vshrl.u32 %v71, 7
    %v73 = vsub.s32 0, %v72
    %v74 = vrot.slane %v69, %v73
    %vm76 = vcmask 130048
    %v78 = vsel %vm76, %v66, 0
    %80 = vmatprep.subr.mxu0 0.0
    %81 = vmatpush1.msra.mxu0 %v67
    %82 = vmatprep.subr.mxu0 0.0
    %83 = vmatpush1.msra.mxu0 %v68
    %84 = vmatprep.subr.mxu0 0.0
    %85 = vmatpush1.msra.mxu0 0.0
    %86 = vmatprep.subr.mxu0 0.0
    %87 = vmatpush1.msra.mxu0 0.0
    %88 = vmatprep.subr.mxu0 0.0
    %89 = vmatpush1.msra.mxu0 0.0
    %90 = vmatprep.subr.mxu0 0.0
    %91 = vmatpush1.msra.mxu0 0.0
    %92 = vmatprep.subr.mxu0 0.0
    %93 = vmatpush1.msra.mxu0 0.0
    %94 = vmatprep.subr.mxu0 0.0
    %95 = vmatpush1.msra.mxu0 0.0
    %96 = vmatprep.subr.mxu0 0.0
    %97 = vmatpush1.msra.mxu0 0.0
    %98 = vmatprep.subr.mxu0 0.0
    %99 = vmatpush1.msra.mxu0 0.0
    %100 = vmatprep.subr.mxu0 0.0
    %101 = vmatpush1.msra.mxu0 0.0
    %102 = vmatprep.subr.mxu0 0.0
    %103 = vmatpush1.msra.mxu0 0.0
    %104 = vmatprep.subr.mxu0 0.0
    %105 = vmatpush1.msra.mxu0 0.0
    %106 = vmatprep.subr.mxu0 0.0
    %107 = vmatpush1.msra.mxu0 0.0
    %108 = vmatprep.subr.mxu0 0.0
    %109 = vmatpush1.msra.mxu0 0.0
    %110 = vmatprep.subr.mxu0 0.0
    %111 = vmatpush1.msra.mxu0 0.0
    %112 = vmatprep.subr.mxu0 0.0
    %113 = vmatpush1.msra.mxu0 0.0
    %114 = vmatprep.subr.mxu0 0.0
    %115 = vmatpush1.msra.mxu0 0.0
    %116 = vmatprep.subr.mxu0 0.0
    %117 = vmatpush1.msra.mxu0 0.0
    %118 = vmatprep.subr.mxu0 0.0
    %119 = vmatpush1.msra.mxu0 0.0
    %120 = vmatprep.subr.mxu0 0.0
    %121 = vmatpush1.msra.mxu0 0.0
    %122 = vmatprep.subr.mxu0 0.0
    %123 = vmatpush1.msra.mxu0 0.0
    %124 = vmatprep.subr.mxu0 0.0
    %125 = vmatpush1.msra.mxu0 0.0
    %126 = vmatprep.subr.mxu0 0.0
    %127 = vmatpush1.msra.mxu0 0.0
    %128 = vmatprep.subr.mxu0 0.0
    %129 = vmatpush1.msra.mxu0 0.0
    %130 = vmatprep.subr.mxu0 0.0
    %131 = vmatpush1.msra.mxu0 0.0
    %132 = vmatprep.subr.mxu0 0.0
    %133 = vmatpush1.msra.mxu0 0.0
    %134 = vmatprep.subr.mxu0 0.0
    %135 = vmatpush1.msra.mxu0 0.0
    %136 = vmatprep.subr.mxu0 0.0
    %137 = vmatpush1.msra.mxu0 0.0
    %138 = vmatprep.subr.mxu0 0.0
    %139 = vmatpush1.msra.mxu0 0.0
    %140 = vmatprep.subr.mxu0 0.0
    %141 = vmatpush1.msra.mxu0 0.0
    %142 = vmatprep.subr.mxu0 0.0
    %143 = vmatpush1.msra.mxu0 0.0
    %144 = vmatprep.mubr.f32.mxu0 0.0
    %145 = vmatmul.mubr.f32.gmra.mrb[0].mxu0 %v78
    %v146 = vpop.f32.mrb[0].mxu0
    %v147 = vadd.f32 %v74, %v146
    %v148 = vpop.f32.mrb[0].mxu0
    %149 = vdwg.mxu0
    %150 = vst [vmem:[#allocation2] sm:$0xff] %v147
    %v151 = vld [vmem:[#allocation3] sm:$0x1]
    %v152 = vld [vmem:[#allocation9] sm:$0xff]
    %v153 = vld [vmem:[#allocation9 + $0x8] sm:$0xff]
    %v154 = vld [vmem:[#allocation9 + $0x10] sm:$0xff]
    %v155 = vld [vmem:[#allocation9 + $0x18] sm:$0xff]
    %v156 = vld [vmem:[#allocation9 + $0x20] sm:$0xff]
    %v157 = vld [vmem:[#allocation9 + $0x28] sm:$0xff]
    %v158 = vld [vmem:[#allocation9 + $0x30] sm:$0xff]
    %v159 = vld [vmem:[#allocation9 + $0x38] sm:$0xff]
    %v160 = vld [vmem:[#allocation9 + $0x40] sm:$0xff]
    %v161 = vld [vmem:[#allocation9 + $0x48] sm:$0xff]
    %v162 = vld [vmem:[#allocation9 + $0x50] sm:$0xff]
    %v163 = vld [vmem:[#allocation9 + $0x58] sm:$0xff]
    %v164 = vld [vmem:[#allocation9 + $0x60] sm:$0xff]
    %v165 = vld [vmem:[#allocation9 + $0x68] sm:$0xff]
    %v166 = vld [vmem:[#allocation9 + $0x70] sm:$0xff]
    %v167 = vld [vmem:[#allocation9 + $0x78] sm:$0xff]
    %168 = vmatprep.subr.mxu0 0.0
    %169 = vmatpush1.msra.mxu0 %v152
    %170 = vmatprep.subr.mxu0 0.0
    %171 = vmatpush1.msra.mxu0 %v153
    %172 = vmatprep.subr.mxu0 0.0
    %173 = vmatpush1.msra.mxu0 %v154
    %174 = vmatprep.subr.mxu0 0.0
    %175 = vmatpush1.msra.mxu0 %v155
    %176 = vmatprep.subr.mxu0 0.0
    %177 = vmatpush1.msra.mxu0 %v156
    %178 = vmatprep.subr.mxu0 0.0
    %179 = vmatpush1.msra.mxu0 %v157
    %180 = vmatprep.subr.mxu0 0.0
    %181 = vmatpush1.msra.mxu0 %v158
    %182 = vmatprep.subr.mxu0 0.0
    %183 = vmatpush1.msra.mxu0 %v159
    %184 = vmatprep.subr.mxu0 0.0
    %185 = vmatpush1.msra.mxu0 %v160
    %186 = vmatprep.subr.mxu0 0.0
    %187 = vmatpush1.msra.mxu0 %v161
    %188 = vmatprep.subr.mxu0 0.0
    %189 = vmatpush1.msra.mxu0 %v162
    %190 = vmatprep.subr.mxu0 0.0
    %191 = vmatpush1.msra.mxu0 %v163
    %192 = vmatprep.subr.mxu0 0.0
    %193 = vmatpush1.msra.mxu0 %v164
    %194 = vmatprep.subr.mxu0 0.0
    %195 = vmatpush1.msra.mxu0 %v165
    %196 = vmatprep.subr.mxu0 0.0
    %197 = vmatpush1.msra.mxu0 %v166
    %198 = vmatprep.subr.mxu0 0.0
    %199 = vmatpush1.msra.mxu0 %v167
    %200 = vmatprep.subr.mxu0 0.0
    %201 = vmatpush1.msra.mxu0 0.0
    %202 = vmatprep.subr.mxu0 0.0
    %203 = vmatpush1.msra.mxu0 0.0
    %204 = vmatprep.subr.mxu0 0.0
    %205 = vmatpush1.msra.mxu0 0.0
    %206 = vmatprep.subr.mxu0 0.0
    %207 = vmatpush1.msra.mxu0 0.0
    %208 = vmatprep.subr.mxu0 0.0
    %209 = vmatpush1.msra.mxu0 0.0
    %210 = vmatprep.subr.mxu0 0.0
    %211 = vmatpush1.msra.mxu0 0.0
    %212 = vmatprep.subr.mxu0 0.0
    %213 = vmatpush1.msra.mxu0 0.0
    %214 = vmatprep.subr.mxu0 0.0
    %215 = vmatpush1.msra.mxu0 0.0
    %216 = vmatprep.subr.mxu0 0.0
    %217 = vmatpush1.msra.mxu0 0.0
    %218 = vmatprep.subr.mxu0 0.0
    %219 = vmatpush1.msra.mxu0 0.0
    %220 = vmatprep.subr.mxu0 0.0
    %221 = vmatpush1.msra.mxu0 0.0
    %222 = vmatprep.subr.mxu0 0.0
    %223 = vmatpush1.msra.mxu0 0.0
    %224 = vmatprep.subr.mxu0 0.0
    %225 = vmatpush1.msra.mxu0 0.0
    %226 = vmatprep.subr.mxu0 0.0
    %227 = vmatpush1.msra.mxu0 0.0
    %228 = vmatprep.subr.mxu0 0.0
    %229 = vmatpush1.msra.mxu0 0.0
    %230 = vmatprep.subr.mxu0 0.0
    %231 = vmatpush1.msra.mxu0 0.0
    %232 = vmatprep.mubr.f32.mxu0 0.0
    %233 = vmatmul.mubr.f32.gmra.mrb[0].mxu0 %v151
    %v234 = vpop.f32.mrb[0].mxu0
    %v235 = vadd.f32 0.0, %v234
    %v236 = vpop.f32.mrb[0].mxu0
    %237 = vdwg.mxu0
    %v238 = vld [vmem:[#allocation2] sm:$0x1]
    %v239 = vadd.f32 %v238, %v235
    %v240 = vtanh.pop %v239
    %v241 = vmul.f32 %v240, 0.96
    %v242 = vmul.f32 %v151, 0.04
    %v243 = vadd.f32 %v241, %v242
    %244 = vst [vmem:[#allocation10] sm:$0x1] %v243
    %v245 = vmul.f32 %v240, 0.8
    %v246 = vmul.f32 %v151, 0.2
    %v247 = vadd.f32 %v245, %v246
    %v248 = vld [vmem:[#allocation9] sm:$0xff]
    %v249 = vld [vmem:[#allocation9 + $0x8] sm:$0xff]
    %v250 = vld [vmem:[#allocation9 + $0x10] sm:$0xff]
    %v251 = vld [vmem:[#allocation9 + $0x18] sm:$0xff]
    %v252 = vld [vmem:[#allocation9 + $0x20] sm:$0xff]
    %v253 = vld [vmem:[#allocation9 + $0x28] sm:$0xff]
    %v254 = vld [vmem:[#allocation9 + $0x30] sm:$0xff]
    %v255 = vld [vmem:[#allocation9 + $0x38] sm:$0xff]
    %v256 = vld [vmem:[#allocation9 + $0x40] sm:$0xff]
    %v257 = vld [vmem:[#allocation9 + $0x48] sm:$0xff]
    %v258 = vld [vmem:[#allocation9 + $0x50] sm:$0xff]
    %v259 = vld [vmem:[#allocation9 + $0x58] sm:$0xff]
    %v260 = vld [vmem:[#allocation9 + $0x60] sm:$0xff]
    %v261 = vld [vmem:[#allocation9 + $0x68] sm:$0xff]
    %v262 = vld [vmem:[#allocation9 + $0x70] sm:$0xff]
    %v263 = vld [vmem:[#allocation9 + $0x78] sm:$0xff]
    %264 = vmatprep.subr.mxu0 0.0
    %265 = vmatpush1.msra.mxu0 %v248
    %266 = vmatprep.subr.mxu0 0.0
    %267 = vmatpush1.msra.mxu0 %v249
    %268 = vmatprep.subr.mxu0 0.0
    %269 = vmatpush1.msra.mxu0 %v250
    %270 = vmatprep.subr.mxu0 0.0
    %271 = vmatpush1.msra.mxu0 %v251
    %272 = vmatprep.subr.mxu0 0.0
    %273 = vmatpush1.msra.mxu0 %v252
    %274 = vmatprep.subr.mxu0 0.0
    %275 = vmatpush1.msra.mxu0 %v253
    %276 = vmatprep.subr.mxu0 0.0
    %277 = vmatpush1.msra.mxu0 %v254
    %278 = vmatprep.subr.mxu0 0.0
    %279 = vmatpush1.msra.mxu0 %v255
    %280 = vmatprep.subr.mxu0 0.0
    %281 = vmatpush1.msra.mxu0 %v256
    %282 = vmatprep.subr.mxu0 0.0
    %283 = vmatpush1.msra.mxu0 %v257
    %284 = vmatprep.subr.mxu0 0.0
    %285 = vmatpush1.msra.mxu0 %v258
    %286 = vmatprep.subr.mxu0 0.0
    %287 = vmatpush1.msra.mxu0 %v259
    %288 = vmatprep.subr.mxu0 0.0
    %289 = vmatpush1.msra.mxu0 %v260
    %290 = vmatprep.subr.mxu0 0.0
    %291 = vmatpush1.msra.mxu0 %v261
    %292 = vmatprep.subr.mxu0 0.0
    %293 = vmatpush1.msra.mxu0 %v262
    %294 = vmatprep.subr.mxu0 0.0
    %295 = vmatpush1.msra.mxu0 %v263
    %296 = vmatprep.subr.mxu0 0.0
    %297 = vmatpush1.msra.mxu0 0.0
    %298 = vmatprep.subr.mxu0 0.0
    %299 = vmatpush1.msra.mxu0 0.0
    %300 = vmatprep.subr.mxu0 0.0
    %301 = vmatpush1.msra.mxu0 0.0
    %302 = vmatprep.subr.mxu0 0.0
    %303 = vmatpush1.msra.mxu0 0.0
    %304 = vmatprep.subr.mxu0 0.0
    %305 = vmatpush1.msra.mxu0 0.0
    %306 = vmatprep.subr.mxu0 0.0
    %307 = vmatpush1.msra.mxu0 0.0
    %308 = vmatprep.subr.mxu0 0.0
    %309 = vmatpush1.msra.mxu0 0.0
    %310 = vmatprep.subr.mxu0 0.0
    %311 = vmatpush1.msra.mxu0 0.0
    %312 = vmatprep.subr.mxu0 0.0
    %313 = vmatpush1.msra.mxu0 0.0
    %314 = vmatprep.subr.mxu0 0.0
    %315 = vmatpush1.msra.mxu0 0.0
    %316 = vmatprep.subr.mxu0 0.0
    %317 = vmatpush1.msra.mxu0 0.0
    %318 = vmatprep.subr.mxu0 0.0
    %319 = vmatpush1.msra.mxu0 0.0
    %320 = vmatprep.subr.mxu0 0.0
    %321 = vmatpush1.msra.mxu0 0.0
    %322 = vmatprep.subr.mxu0 0.0
    %323 = vmatpush1.msra.mxu0 0.0
    %324 = vmatprep.subr.mxu0 0.0
    %325 = vmatpush1.msra.mxu0 0.0
    %326 = vmatprep.subr.mxu0 0.0
    %327 = vmatpush1.msra.mxu0 0.0
    %328 = vmatprep.mubr.f32.mxu0 0.0
    %329 = vmatmul.mubr.f32.gmra.mrb[0].mxu0 %v247
    %v330 = vpop.f32.mrb[0].mxu0
    %v331 = vadd.f32 0.0, %v330
    %v332 = vpop.f32.mrb[0].mxu0
    %333 = vdwg.mxu0
    %v334 = vld [vmem:[#allocation2 + $0x1] sm:$0x1]
    %v335 = vadd.f32 %v334, %v331
    %v336 = vtanh.pop %v335
    %v337 = vmul.f32 %v336, 0.96
    %v338 = vmul.f32 %v247, 0.04
    %v339 = vadd.f32 %v337, %v338
    %340 = vst [vmem:[#allocation10 + $0x1] sm:$0x1] %v339
    %v341 = vmul.f32 %v336, 0.8
    %v342 = vmul.f32 %v247, 0.2
    %v343 = vadd.f32 %v341, %v342
    %v344 = vld [vmem:[#allocation9] sm:$0xff]
    %v345 = vld [vmem:[#allocation9 + $0x8] sm:$0xff]
    %v346 = vld [vmem:[#allocation9 + $0x10] sm:$0xff]
    %v347 = vld [vmem:[#allocation9 + $0x18] sm:$0xff]
    %v348 = vld [vmem:[#allocation9 + $0x20] sm:$0xff]
    %v349 = vld [vmem:[#allocation9 + $0x28] sm:$0xff]
    %v350 = vld [vmem:[#allocation9 + $0x30] sm:$0xff]
    %v351 = vld [vmem:[#allocation9 + $0x38] sm:$0xff]
    %v352 = vld [vmem:[#allocation9 + $0x40] sm:$0xff]
    %v353 = vld [vmem:[#allocation9 + $0x48] sm:$0xff]
    %v354 = vld [vmem:[#allocation9 + $0x50] sm:$0xff]
    %v355 = vld [vmem:[#allocation9 + $0x58] sm:$0xff]
    %v356 = vld [vmem:[#allocation9 + $0x60] sm:$0xff]
    %v357 = vld [vmem:[#allocation9 + $0x68] sm:$0xff]
    %v358 = vld [vmem:[#allocation9 + $0x70] sm:$0xff]
    %v359 = vld [vmem:[#allocation9 + $0x78] sm:$0xff]
    %360 = vmatprep.subr.mxu0 0.0
    %361 = vmatpush1.msra.mxu0 %v344
    %362 = vmatprep.subr.mxu0 0.0
    %363 = vmatpush1.msra.mxu0 %v345
    %364 = vmatprep.subr.mxu0 0.0
    %365 = vmatpush1.msra.mxu0 %v346
    %366 = vmatprep.subr.mxu0 0.0
    %367 = vmatpush1.msra.mxu0 %v347
    %368 = vmatprep.subr.mxu0 0.0
    %369 = vmatpush1.msra.mxu0 %v348
    %370 = vmatprep.subr.mxu0 0.0
    %371 = vmatpush1.msra.mxu0 %v349
    %372 = vmatprep.subr.mxu0 0.0
    %373 = vmatpush1.msra.mxu0 %v350
    %374 = vmatprep.subr.mxu0 0.0
    %375 = vmatpush1.msra.mxu0 %v351
    %376 = vmatprep.subr.mxu0 0.0
    %377 = vmatpush1.msra.mxu0 %v352
    %378 = vmatprep.subr.mxu0 0.0
    %379 = vmatpush1.msra.mxu0 %v353
    %380 = vmatprep.subr.mxu0 0.0
    %381 = vmatpush1.msra.mxu0 %v354
    %382 = vmatprep.subr.mxu0 0.0
    %383 = vmatpush1.msra.mxu0 %v355
    %384 = vmatprep.subr.mxu0 0.0
    %385 = vmatpush1.msra.mxu0 %v356
    %386 = vmatprep.subr.mxu0 0.0
    %387 = vmatpush1.msra.mxu0 %v357
    %388 = vmatprep.subr.mxu0 0.0
    %389 = vmatpush1.msra.mxu0 %v358
    %390 = vmatprep.subr.mxu0 0.0
    %391 = vmatpush1.msra.mxu0 %v359
    %392 = vmatprep.subr.mxu0 0.0
    %393 = vmatpush1.msra.mxu0 0.0
    %394 = vmatprep.subr.mxu0 0.0
    %395 = vmatpush1.msra.mxu0 0.0
    %396 = vmatprep.subr.mxu0 0.0
    %397 = vmatpush1.msra.mxu0 0.0
    %398 = vmatprep.subr.mxu0 0.0
    %399 = vmatpush1.msra.mxu0 0.0
    %400 = vmatprep.subr.mxu0 0.0
    %401 = vmatpush1.msra.mxu0 0.0
    %402 = vmatprep.subr.mxu0 0.0
    %403 = vmatpush1.msra.mxu0 0.0
    %404 = vmatprep.subr.mxu0 0.0
    %405 = vmatpush1.msra.mxu0 0.0
    %406 = vmatprep.subr.mxu0 0.0
    %407 = vmatpush1.msra.mxu0 0.0
    %408 = vmatprep.subr.mxu0 0.0
    %409 = vmatpush1.msra.mxu0 0.0
    %410 = vmatprep.subr.mxu0 0.0
    %411 = vmatpush1.msra.mxu0 0.0
    %412 = vmatprep.subr.mxu0 0.0
    %413 = vmatpush1.msra.mxu0 0.0
    %414 = vmatprep.subr.mxu0 0.0
    %415 = vmatpush1.msra.mxu0 0.0
    %416 = vmatprep.subr.mxu0 0.0
    %417 = vmatpush1.msra.mxu0 0.0
    %418 = vmatprep.subr.mxu0 0.0
    %419 = vmatpush1.msra.mxu0 0.0
    %420 = vmatprep.subr.mxu0 0.0
    %421 = vmatpush1.msra.mxu0 0.0
    %422 = vmatprep.subr.mxu0 0.0
    %423 = vmatpush1.msra.mxu0 0.0
    %424 = vmatprep.mubr.f32.mxu0 0.0
    %425 = vmatmul.mubr.f32.gmra.mrb[0].mxu0 %v343
    %v426 = vpop.f32.mrb[0].mxu0
    %v427 = vadd.f32 0.0, %v426
    %v428 = vpop.f32.mrb[0].mxu0
    %429 = vdwg.mxu0
    %v430 = vld [vmem:[#allocation2 + $0x2] sm:$0x1]
    %v431 = vadd.f32 %v430, %v427
    %v432 = vtanh.pop %v431
    %v433 = vmul.f32 %v432, 0.96
    %v434 = vmul.f32 %v343, 0.04
    %v435 = vadd.f32 %v433, %v434
    %436 = vst [vmem:[#allocation10 + $0x2] sm:$0x1] %v435
    %v437 = vmul.f32 %v432, 0.8
    %v438 = vmul.f32 %v343, 0.2
    %v439 = vadd.f32 %v437, %v438
    %v440 = vld [vmem:[#allocation9] sm:$0xff]
    %v441 = vld [vmem:[#allocation9 + $0x8] sm:$0xff]
    %v442 = vld [vmem:[#allocation9 + $0x10] sm:$0xff]
    %v443 = vld [vmem:[#allocation9 + $0x18] sm:$0xff]
    %v444 = vld [vmem:[#allocation9 + $0x20] sm:$0xff]
    %v445 = vld [vmem:[#allocation9 + $0x28] sm:$0xff]
    %v446 = vld [vmem:[#allocation9 + $0x30] sm:$0xff]
    %v447 = vld [vmem:[#allocation9 + $0x38] sm:$0xff]
    %v448 = vld [vmem:[#allocation9 + $0x40] sm:$0xff]
    %v449 = vld [vmem:[#allocation9 + $0x48] sm:$0xff]
    %v450 = vld [vmem:[#allocation9 + $0x50] sm:$0xff]
    %v451 = vld [vmem:[#allocation9 + $0x58] sm:$0xff]
    %v452 = vld [vmem:[#allocation9 + $0x60] sm:$0xff]
    %v453 = vld [vmem:[#allocation9 + $0x68] sm:$0xff]
    %v454 = vld [vmem:[#allocation9 + $0x70] sm:$0xff]
    %v455 = vld [vmem:[#allocation9 + $0x78] sm:$0xff]
    %456 = vmatprep.subr.mxu0 0.0
    %457 = vmatpush1.msra.mxu0 %v440
    %458 = vmatprep.subr.mxu0 0.0
    %459 = vmatpush1.msra.mxu0 %v441
    %460 = vmatprep.subr.mxu0 0.0
    %461 = vmatpush1.msra.mxu0 %v442
    %462 = vmatprep.subr.mxu0 0.0
    %463 = vmatpush1.msra.mxu0 %v443
    %464 = vmatprep.subr.mxu0 0.0
    %465 = vmatpush1.msra.mxu0 %v444
    %466 = vmatprep.subr.mxu0 0.0
    %467 = vmatpush1.msra.mxu0 %v445
    %468 = vmatprep.subr.mxu0 0.0
    %469 = vmatpush1.msra.mxu0 %v446
    %470 = vmatprep.subr.mxu0 0.0
    %471 = vmatpush1.msra.mxu0 %v447
    %472 = vmatprep.subr.mxu0 0.0
    %473 = vmatpush1.msra.mxu0 %v448
    %474 = vmatprep.subr.mxu0 0.0
    %475 = vmatpush1.msra.mxu0 %v449
    %476 = vmatprep.subr.mxu0 0.0
    %477 = vmatpush1.msra.mxu0 %v450
    %478 = vmatprep.subr.mxu0 0.0
    %479 = vmatpush1.msra.mxu0 %v451
    %480 = vmatprep.subr.mxu0 0.0
    %481 = vmatpush1.msra.mxu0 %v452
    %482 = vmatprep.subr.mxu0 0.0
    %483 = vmatpush1.msra.mxu0 %v453
    %484 = vmatprep.subr.mxu0 0.0
    %485 = vmatpush1.msra.mxu0 %v454
    %486 = vmatprep.subr.mxu0 0.0
    %487 = vmatpush1.msra.mxu0 %v455
    %488 = vmatprep.subr.mxu0 0.0
    %489 = vmatpush1.msra.mxu0 0.0
    %490 = vmatprep.subr.mxu0 0.0
    %491 = vmatpush1.msra.mxu0 0.0
    %492 = vmatprep.subr.mxu0 0.0
    %493 = vmatpush1.msra.mxu0 0.0
    %494 = vmatprep.subr.mxu0 0.0
    %495 = vmatpush1.msra.mxu0 0.0
    %496 = vmatprep.subr.mxu0 0.0
    %497 = vmatpush1.msra.mxu0 0.0
    %498 = vmatprep.subr.mxu0 0.0
    %499 = vmatpush1.msra.mxu0 0.0
    %500 = vmatprep.subr.mxu0 0.0
    %501 = vmatpush1.msra.mxu0 0.0
    %502 = vmatprep.subr.mxu0 0.0
    %503 = vmatpush1.msra.mxu0 0.0
    %504 = vmatprep.subr.mxu0 0.0
    %505 = vmatpush1.msra.mxu0 0.0
    %506 = vmatprep.subr.mxu0 0.0
    %507 = vmatpush1.msra.mxu0 0.0
    %508 = vmatprep.subr.mxu0 0.0
    %509 = vmatpush1.msra.mxu0 0.0
    %510 = vmatprep.subr.mxu0 0.0
    %511 = vmatpush1.msra.mxu0 0.0
    %512 = vmatprep.subr.mxu0 0.0
    %513 = vmatpush1.msra.mxu0 0.0
    %514 = vmatprep.subr.mxu0 0.0
    %515 = vmatpush1.msra.mxu0 0.0
    %516 = vmatprep.subr.mxu0 0.0
    %517 = vmatpush1.msra.mxu0 0.0
    %518 = vmatprep.subr.mxu0 0.0
    %519 = vmatpush1.msra.mxu0 0.0
    %520 = vmatprep.mubr.f32.mxu0 0.0
    %521 = vmatmul.mubr.f32.gmra.mrb[0].mxu0 %v439
    %v522 = vpop.f32.mrb[0].mxu0
    %v523 = vadd.f32 0.0, %v522
    %v524 = vpop.f32.mrb[0].mxu0
    %525 = vdwg.mxu0
    %v526 = vld [vmem:[#allocation2 + $0x3] sm:$0x1]
    %v527 = vadd.f32 %v526, %v523
    %v528 = vtanh.pop %v527
    %v529 = vmul.f32 %v528, 0.96
    %v530 = vmul.f32 %v439, 0.04
    %v531 = vadd.f32 %v529, %v530
    %532 = vst [vmem:[#allocation10 + $0x3] sm:$0x1] %v531
    %v533 = vmul.f32 %v528, 0.8
    %v534 = vmul.f32 %v439, 0.2
    %v535 = vadd.f32 %v533, %v534
    %v536 = vld [vmem:[#allocation9] sm:$0xff]
    %v537 = vld [vmem:[#allocation9 + $0x8] sm:$0xff]
    %v538 = vld [vmem:[#allocation9 + $0x10] sm:$0xff]
    %v539 = vld [vmem:[#allocation9 + $0x18] sm:$0xff]
    %v540 = vld [vmem:[#allocation9 + $0x20] sm:$0xff]
    %v541 = vld [vmem:[#allocation9 + $0x28] sm:$0xff]
    %v542 = vld [vmem:[#allocation9 + $0x30] sm:$0xff]
    %v543 = vld [vmem:[#allocation9 + $0x38] sm:$0xff]
    %v544 = vld [vmem:[#allocation9 + $0x40] sm:$0xff]
    %v545 = vld [vmem:[#allocation9 + $0x48] sm:$0xff]
    %v546 = vld [vmem:[#allocation9 + $0x50] sm:$0xff]
    %v547 = vld [vmem:[#allocation9 + $0x58] sm:$0xff]
    %v548 = vld [vmem:[#allocation9 + $0x60] sm:$0xff]
    %v549 = vld [vmem:[#allocation9 + $0x68] sm:$0xff]
    %v550 = vld [vmem:[#allocation9 + $0x70] sm:$0xff]
    %v551 = vld [vmem:[#allocation9 + $0x78] sm:$0xff]
    %552 = vmatprep.subr.mxu0 0.0
    %553 = vmatpush1.msra.mxu0 %v536
    %554 = vmatprep.subr.mxu0 0.0
    %555 = vmatpush1.msra.mxu0 %v537
    %556 = vmatprep.subr.mxu0 0.0
    %557 = vmatpush1.msra.mxu0 %v538
    %558 = vmatprep.subr.mxu0 0.0
    %559 = vmatpush1.msra.mxu0 %v539
    %560 = vmatprep.subr.mxu0 0.0
    %561 = vmatpush1.msra.mxu0 %v540
    %562 = vmatprep.subr.mxu0 0.0
    %563 = vmatpush1.msra.mxu0 %v541
    %564 = vmatprep.subr.mxu0 0.0
    %565 = vmatpush1.msra.mxu0 %v542
    %566 = vmatprep.subr.mxu0 0.0
    %567 = vmatpush1.msra.mxu0 %v543
    %568 = vmatprep.subr.mxu0 0.0
    %569 = vmatpush1.msra.mxu0 %v544
    %570 = vmatprep.subr.mxu0 0.0
    %571 = vmatpush1.msra.mxu0 %v545
    %572 = vmatprep.subr.mxu0 0.0
    %573 = vmatpush1.msra.mxu0 %v546
    %574 = vmatprep.subr.mxu0 0.0
    %575 = vmatpush1.msra.mxu0 %v547
    %576 = vmatprep.subr.mxu0 0.0
    %577 = vmatpush1.msra.mxu0 %v548
    %578 = vmatprep.subr.mxu0 0.0
    %579 = vmatpush1.msra.mxu0 %v549
    %580 = vmatprep.subr.mxu0 0.0
    %581 = vmatpush1.msra.mxu0 %v550
    %582 = vmatprep.subr.mxu0 0.0
    %583 = vmatpush1.msra.mxu0 %v551
    %584 = vmatprep.subr.mxu0 0.0
    %585 = vmatpush1.msra.mxu0 0.0
    %586 = vmatprep.subr.mxu0 0.0
    %587 = vmatpush1.msra.mxu0 0.0
    %588 = vmatprep.subr.mxu0 0.0
    %589 = vmatpush1.msra.mxu0 0.0
    %590 = vmatprep.subr.mxu0 0.0
    %591 = vmatpush1.msra.mxu0 0.0
    %592 = vmatprep.subr.mxu0 0.0
    %593 = vmatpush1.msra.mxu0 0.0
    %594 = vmatprep.subr.mxu0 0.0
    %595 = vmatpush1.msra.mxu0 0.0
    %596 = vmatprep.subr.mxu0 0.0
    %597 = vmatpush1.msra.mxu0 0.0
    %598 = vmatprep.subr.mxu0 0.0
    %599 = vmatpush1.msra.mxu0 0.0
    %600 = vmatprep.subr.mxu0 0.0
    %601 = vmatpush1.msra.mxu0 0.0
    %602 = vmatprep.subr.mxu0 0.0
    %603 = vmatpush1.msra.mxu0 0.0
    %604 = vmatprep.subr.mxu0 0.0
    %605 = vmatpush1.msra.mxu0 0.0
    %606 = vmatprep.subr.mxu0 0.0
    %607 = vmatpush1.msra.mxu0 0.0
    %608 = vmatprep.subr.mxu0 0.0
    %609 = vmatpush1.msra.mxu0 0.0
    %610 = vmatprep.subr.mxu0 0.0
    %611 = vmatpush1.msra.mxu0 0.0
    %612 = vmatprep.subr.mxu0 0.0
    %613 = vmatpush1.msra.mxu0 0.0
    %614 = vmatprep.subr.mxu0 0.0
    %615 = vmatpush1.msra.mxu0 0.0
    %616 = vmatprep.mubr.f32.mxu0 0.0
    %617 = vmatmul.mubr.f32.gmra.mrb[0].mxu0 %v535
    %v618 = vpop.f32.mrb[0].mxu0
    %v619 = vadd.f32 0.0, %v618
    %v620 = vpop.f32.mrb[0].mxu0
    %621 = vdwg.mxu0
    %v622 = vld [vmem:[#allocation2 + $0x4] sm:$0x1]
    %v623 = vadd.f32 %v622, %v619
    %v624 = vtanh.pop %v623
    %v625 = vmul.f32 %v624, 0.96
    %v626 = vmul.f32 %v535, 0.04
    %v627 = vadd.f32 %v625, %v626
    %628 = vst [vmem:[#allocation10 + $0x4] sm:$0x1] %v627
    %v629 = vmul.f32 %v624, 0.8
    %v630 = vmul.f32 %v535, 0.2
    %v631 = vadd.f32 %v629, %v630
    %v632 = vld [vmem:[#allocation9] sm:$0xff]
    %v633 = vld [vmem:[#allocation9 + $0x8] sm:$0xff]
    %v634 = vld [vmem:[#allocation9 + $0x10] sm:$0xff]
    %v635 = vld [vmem:[#allocation9 + $0x18] sm:$0xff]
    %v636 = vld [vmem:[#allocation9 + $0x20] sm:$0xff]
    %v637 = vld [vmem:[#allocation9 + $0x28] sm:$0xff]
    %v638 = vld [vmem:[#allocation9 + $0x30] sm:$0xff]
    %v639 = vld [vmem:[#allocation9 + $0x38] sm:$0xff]
    %v640 = vld [vmem:[#allocation9 + $0x40] sm:$0xff]
    %v641 = vld [vmem:[#allocation9 + $0x48] sm:$0xff]
    %v642 = vld [vmem:[#allocation9 + $0x50] sm:$0xff]
    %v643 = vld [vmem:[#allocation9 + $0x58] sm:$0xff]
    %v644 = vld [vmem:[#allocation9 + $0x60] sm:$0xff]
    %v645 = vld [vmem:[#allocation9 + $0x68] sm:$0xff]
    %v646 = vld [vmem:[#allocation9 + $0x70] sm:$0xff]
    %v647 = vld [vmem:[#allocation9 + $0x78] sm:$0xff]
    %648 = vmatprep.subr.mxu0 0.0
    %649 = vmatpush1.msra.mxu0 %v632
    %650 = vmatprep.subr.mxu0 0.0
    %651 = vmatpush1.msra.mxu0 %v633
    %652 = vmatprep.subr.mxu0 0.0
    %653 = vmatpush1.msra.mxu0 %v634
    %654 = vmatprep.subr.mxu0 0.0
    %655 = vmatpush1.msra.mxu0 %v635
    %656 = vmatprep.subr.mxu0 0.0
    %657 = vmatpush1.msra.mxu0 %v636
    %658 = vmatprep.subr.mxu0 0.0
    %659 = vmatpush1.msra.mxu0 %v637
    %660 = vmatprep.subr.mxu0 0.0
    %661 = vmatpush1.msra.mxu0 %v638
    %662 = vmatprep.subr.mxu0 0.0
    %663 = vmatpush1.msra.mxu0 %v639
    %664 = vmatprep.subr.mxu0 0.0
    %665 = vmatpush1.msra.mxu0 %v640
    %666 = vmatprep.subr.mxu0 0.0
    %667 = vmatpush1.msra.mxu0 %v641
    %668 = vmatprep.subr.mxu0 0.0
    %669 = vmatpush1.msra.mxu0 %v642
    %670 = vmatprep.subr.mxu0 0.0
    %671 = vmatpush1.msra.mxu0 %v643
    %672 = vmatprep.subr.mxu0 0.0
    %673 = vmatpush1.msra.mxu0 %v644
    %674 = vmatprep.subr.mxu0 0.0
    %675 = vmatpush1.msra.mxu0 %v645
    %676 = vmatprep.subr.mxu0 0.0
    %677 = vmatpush1.msra.mxu0 %v646
    %678 = vmatprep.subr.mxu0 0.0
    %679 = vmatpush1.msra.mxu0 %v647
    %680 = vmatprep.subr.mxu0 0.0
    %681 = vmatpush1.msra.mxu0 0.0
    %682 = vmatprep.subr.mxu0 0.0
    %683 = vmatpush1.msra.mxu0 0.0
    %684 = vmatprep.subr.mxu0 0.0
    %685 = vmatpush1.msra.mxu0 0.0
    %686 = vmatprep.subr.mxu0 0.0
    %687 = vmatpush1.msra.mxu0 0.0
    %688 = vmatprep.subr.mxu0 0.0
    %689 = vmatpush1.msra.mxu0 0.0
    %690 = vmatprep.subr.mxu0 0.0
    %691 = vmatpush1.msra.mxu0 0.0
    %692 = vmatprep.subr.mxu0 0.0
    %693 = vmatpush1.msra.mxu0 0.0
    %694 = vmatprep.subr.mxu0 0.0
    %695 = vmatpush1.msra.mxu0 0.0
    %696 = vmatprep.subr.mxu0 0.0
    %697 = vmatpush1.msra.mxu0 0.0
    %698 = vmatprep.subr.mxu0 0.0
    %699 = vmatpush1.msra.mxu0 0.0
    %700 = vmatprep.subr.mxu0 0.0
    %701 = vmatpush1.msra.mxu0 0.0
    %702 = vmatprep.subr.mxu0 0.0
    %703 = vmatpush1.msra.mxu0 0.0
    %704 = vmatprep.subr.mxu0 0.0
    %705 = vmatpush1.msra.mxu0 0.0
    %706 = vmatprep.subr.mxu0 0.0
    %707 = vmatpush1.msra.mxu0 0.0
    %708 = vmatprep.subr.mxu0 0.0
    %709 = vmatpush1.msra.mxu0 0.0
    %710 = vmatprep.subr.mxu0 0.0
    %711 = vmatpush1.msra.mxu0 0.0
    %712 = vmatprep.mubr.f32.mxu0 0.0
    %713 = vmatmul.mubr.f32.gmra.mrb[0].mxu0 %v631
    %v714 = vpop.f32.mrb[0].mxu0
    %v715 = vadd.f32 0.0, %v714
    %v716 = vpop.f32.mrb[0].mxu0
    %717 = vdwg.mxu0
    %v718 = vld [vmem:[#allocation2 + $0x5] sm:$0x1]
    %v719 = vadd.f32 %v718, %v715
    %v720 = vtanh.pop %v719
    %v721 = vmul.f32 %v720, 0.96
    %v722 = vmul.f32 %v631, 0.04
    %v723 = vadd.f32 %v721, %v722
    %724 = vst [vmem:[#allocation10 + $0x5] sm:$0x1] %v723
    %v725 = vmul.f32 %v720, 0.8
    %v726 = vmul.f32 %v631, 0.2
    %v727 = vadd.f32 %v725, %v726
    %v728 = vld [vmem:[#allocation9] sm:$0xff]
    %v729 = vld [vmem:[#allocation9 + $0x8] sm:$0xff]
    %v730 = vld [vmem:[#allocation9 + $0x10] sm:$0xff]
    %v731 = vld [vmem:[#allocation9 + $0x18] sm:$0xff]
    %v732 = vld [vmem:[#allocation9 + $0x20] sm:$0xff]
    %v733 = vld [vmem:[#allocation9 + $0x28] sm:$0xff]
    %v734 = vld [vmem:[#allocation9 + $0x30] sm:$0xff]
    %v735 = vld [vmem:[#allocation9 + $0x38] sm:$0xff]
    %v736 = vld [vmem:[#allocation9 + $0x40] sm:$0xff]
    %v737 = vld [vmem:[#allocation9 + $0x48] sm:$0xff]
    %v738 = vld [vmem:[#allocation9 + $0x50] sm:$0xff]
    %v739 = vld [vmem:[#allocation9 + $0x58] sm:$0xff]
    %v740 = vld [vmem:[#allocation9 + $0x60] sm:$0xff]
    %v741 = vld [vmem:[#allocation9 + $0x68] sm:$0xff]
    %v742 = vld [vmem:[#allocation9 + $0x70] sm:$0xff]
    %v743 = vld [vmem:[#allocation9 + $0x78] sm:$0xff]
    %744 = vmatprep.subr.mxu0 0.0
    %745 = vmatpush1.msra.mxu0 %v728
    %746 = vmatprep.subr.mxu0 0.0
    %747 = vmatpush1.msra.mxu0 %v729
    %748 = vmatprep.subr.mxu0 0.0
    %749 = vmatpush1.msra.mxu0 %v730
    %750 = vmatprep.subr.mxu0 0.0
    %751 = vmatpush1.msra.mxu0 %v731
    %752 = vmatprep.subr.mxu0 0.0
    %753 = vmatpush1.msra.mxu0 %v732
    %754 = vmatprep.subr.mxu0 0.0
    %755 = vmatpush1.msra.mxu0 %v733
    %756 = vmatprep.subr.mxu0 0.0
    %757 = vmatpush1.msra.mxu0 %v734
    %758 = vmatprep.subr.mxu0 0.0
    %759 = vmatpush1.msra.mxu0 %v735
    %760 = vmatprep.subr.mxu0 0.0
    %761 = vmatpush1.msra.mxu0 %v736
    %762 = vmatprep.subr.mxu0 0.0
    %763 = vmatpush1.msra.mxu0 %v737
    %764 = vmatprep.subr.mxu0 0.0
    %765 = vmatpush1.msra.mxu0 %v738
    %766 = vmatprep.subr.mxu0 0.0
    %767 = vmatpush1.msra.mxu0 %v739
    %768 = vmatprep.subr.mxu0 0.0
    %769 = vmatpush1.msra.mxu0 %v740
    %770 = vmatprep.subr.mxu0 0.0
    %771 = vmatpush1.msra.mxu0 %v741
    %772 = vmatprep.subr.mxu0 0.0
    %773 = vmatpush1.msra.mxu0 %v742
    %774 = vmatprep.subr.mxu0 0.0
    %775 = vmatpush1.msra.mxu0 %v743
    %776 = vmatprep.subr.mxu0 0.0
    %777 = vmatpush1.msra.mxu0 0.0
    %778 = vmatprep.subr.mxu0 0.0
    %779 = vmatpush1.msra.mxu0 0.0
    %780 = vmatprep.subr.mxu0 0.0
    %781 = vmatpush1.msra.mxu0 0.0
    %782 = vmatprep.subr.mxu0 0.0
    %783 = vmatpush1.msra.mxu0 0.0
    %784 = vmatprep.subr.mxu0 0.0
    %785 = vmatpush1.msra.mxu0 0.0
    %786 = vmatprep.subr.mxu0 0.0
    %787 = vmatpush1.msra.mxu0 0.0
    %788 = vmatprep.subr.mxu0 0.0
    %789 = vmatpush1.msra.mxu0 0.0
    %790 = vmatprep.subr.mxu0 0.0
    %791 = vmatpush1.msra.mxu0 0.0
    %792 = vmatprep.subr.mxu0 0.0
    %793 = vmatpush1.msra.mxu0 0.0
    %794 = vmatprep.subr.mxu0 0.0
    %795 = vmatpush1.msra.mxu0 0.0
    %796 = vmatprep.subr.mxu0 0.0
    %797 = vmatpush1.msra.mxu0 0.0
    %798 = vmatprep.subr.mxu0 0.0
    %799 = vmatpush1.msra.mxu0 0.0
    %800 = vmatprep.subr.mxu0 0.0
    %801 = vmatpush1.msra.mxu0 0.0
    %802 = vmatprep.subr.mxu0 0.0
    %803 = vmatpush1.msra.mxu0 0.0
    %804 = vmatprep.subr.mxu0 0.0
    %805 = vmatpush1.msra.mxu0 0.0
    %806 = vmatprep.subr.mxu0 0.0
    %807 = vmatpush1.msra.mxu0 0.0
    %808 = vmatprep.mubr.f32.mxu0 0.0
    %809 = vmatmul.mubr.f32.gmra.mrb[0].mxu0 %v727
    %v810 = vpop.f32.mrb[0].mxu0
    %v811 = vadd.f32 0.0, %v810
    %v812 = vpop.f32.mrb[0].mxu0
    %813 = vdwg.mxu0
    %v814 = vld [vmem:[#allocation2 + $0x6] sm:$0x1]
    %v815 = vadd.f32 %v814, %v811
    %v816 = vtanh.pop %v815
    %v817 = vmul.f32 %v816, 0.96
    %v818 = vmul.f32 %v727, 0.04
    %v819 = vadd.f32 %v817, %v818
    %820 = vst [vmem:[#allocation10 + $0x6] sm:$0x1] %v819
    %v821 = vmul.f32 %v816, 0.8
    %v822 = vmul.f32 %v727, 0.2
    %v823 = vadd.f32 %v821, %v822
    %v824 = vld [vmem:[#allocation9] sm:$0xff]
    %v825 = vld [vmem:[#allocation9 + $0x8] sm:$0xff]
    %v826 = vld [vmem:[#allocation9 + $0x10] sm:$0xff]
    %v827 = vld [vmem:[#allocation9 + $0x18] sm:$0xff]
    %v828 = vld [vmem:[#allocation9 + $0x20] sm:$0xff]
    %v829 = vld [vmem:[#allocation9 + $0x28] sm:$0xff]
    %v830 = vld [vmem:[#allocation9 + $0x30] sm:$0xff]
    %v831 = vld [vmem:[#allocation9 + $0x38] sm:$0xff]
    %v832 = vld [vmem:[#allocation9 + $0x40] sm:$0xff]
    %v833 = vld [vmem:[#allocation9 + $0x48] sm:$0xff]
    %v834 = vld [vmem:[#allocation9 + $0x50] sm:$0xff]
    %v835 = vld [vmem:[#allocation9 + $0x58] sm:$0xff]
    %v836 = vld [vmem:[#allocation9 + $0x60] sm:$0xff]
    %v837 = vld [vmem:[#allocation9 + $0x68] sm:$0xff]
    %v838 = vld [vmem:[#allocation9 + $0x70] sm:$0xff]
    %v839 = vld [vmem:[#allocation9 + $0x78] sm:$0xff]
    %840 = vmatprep.subr.mxu0 0.0
    %841 = vmatpush1.msra.mxu0 %v824
    %842 = vmatprep.subr.mxu0 0.0
    %843 = vmatpush1.msra.mxu0 %v825
    %844 = vmatprep.subr.mxu0 0.0
    %845 = vmatpush1.msra.mxu0 %v826
    %846 = vmatprep.subr.mxu0 0.0
    %847 = vmatpush1.msra.mxu0 %v827
    %848 = vmatprep.subr.mxu0 0.0
    %849 = vmatpush1.msra.mxu0 %v828
    %850 = vmatprep.subr.mxu0 0.0
    %851 = vmatpush1.msra.mxu0 %v829
    %852 = vmatprep.subr.mxu0 0.0
    %853 = vmatpush1.msra.mxu0 %v830
    %854 = vmatprep.subr.mxu0 0.0
    %855 = vmatpush1.msra.mxu0 %v831
    %856 = vmatprep.subr.mxu0 0.0
    %857 = vmatpush1.msra.mxu0 %v832
    %858 = vmatprep.subr.mxu0 0.0
    %859 = vmatpush1.msra.mxu0 %v833
    %860 = vmatprep.subr.mxu0 0.0
    %861 = vmatpush1.msra.mxu0 %v834
    %862 = vmatprep.subr.mxu0 0.0
    %863 = vmatpush1.msra.mxu0 %v835
    %864 = vmatprep.subr.mxu0 0.0
    %865 = vmatpush1.msra.mxu0 %v836
    %866 = vmatprep.subr.mxu0 0.0
    %867 = vmatpush1.msra.mxu0 %v837
    %868 = vmatprep.subr.mxu0 0.0
    %869 = vmatpush1.msra.mxu0 %v838
    %870 = vmatprep.subr.mxu0 0.0
    %871 = vmatpush1.msra.mxu0 %v839
    %872 = vmatprep.subr.mxu0 0.0
    %873 = vmatpush1.msra.mxu0 0.0
    %874 = vmatprep.subr.mxu0 0.0
    %875 = vmatpush1.msra.mxu0 0.0
    %876 = vmatprep.subr.mxu0 0.0
    %877 = vmatpush1.msra.mxu0 0.0
    %878 = vmatprep.subr.mxu0 0.0
    %879 = vmatpush1.msra.mxu0 0.0
    %880 = vmatprep.subr.mxu0 0.0
    %881 = vmatpush1.msra.mxu0 0.0
    %882 = vmatprep.subr.mxu0 0.0
    %883 = vmatpush1.msra.mxu0 0.0
    %884 = vmatprep.subr.mxu0 0.0
    %885 = vmatpush1.msra.mxu0 0.0
    %886 = vmatprep.subr.mxu0 0.0
    %887 = vmatpush1.msra.mxu0 0.0
    %888 = vmatprep.subr.mxu0 0.0
    %889 = vmatpush1.msra.mxu0 0.0
    %890 = vmatprep.subr.mxu0 0.0
    %891 = vmatpush1.msra.mxu0 0.0
    %892 = vmatprep.subr.mxu0 0.0
    %893 = vmatpush1.msra.mxu0 0.0
    %894 = vmatprep.subr.mxu0 0.0
    %895 = vmatpush1.msra.mxu0 0.0
    %896 = vmatprep.subr.mxu0 0.0
    %897 = vmatpush1.msra.mxu0 0.0
    %898 = vmatprep.subr.mxu0 0.0
    %899 = vmatpush1.msra.mxu0 0.0
    %900 = vmatprep.subr.mxu0 0.0
    %901 = vmatpush1.msra.mxu0 0.0
    %902 = vmatprep.subr.mxu0 0.0
    %903 = vmatpush1.msra.mxu0 0.0
    %904 = vmatprep.mubr.f32.mxu0 0.0
    %905 = vmatmul.mubr.f32.gmra.mrb[0].mxu0 %v823
    %v906 = vpop.f32.mrb[0].mxu0
    %v907 = vadd.f32 0.0, %v906
    %v908 = vpop.f32.mrb[0].mxu0
    %909 = vdwg.mxu0
    %v910 = vld [vmem:[#allocation2 + $0x7] sm:$0x1]
    %v911 = vadd.f32 %v910, %v907
    %v912 = vtanh.pop %v911
    %v913 = vmul.f32 %v912, 0.96
    %v914 = vmul.f32 %v823, 0.04
    %v915 = vadd.f32 %v913, %v914
    %916 = vst [vmem:[#allocation10 + $0x7] sm:$0x1] %v915
    %v917 = vmul.f32 %v912, 0.8
    %v918 = vmul.f32 %v823, 0.2
    %v919 = vadd.f32 %v917, %v918
    %920 = vst [vmem:[#allocation3] sm:$0x1] %v919
    // Predicated region
    $region38: #{tpu_custom_call.1} parent=1 // pred_check
      _
    $region39: #{tpu_custom_call.1} parent=1 // pred_check_branch
      %922 = sbr.rel (0) target = $region41
    $region40: #{tpu_custom_call.1} parent=1 // pred_region
      %s924 = ssub.s32 128, 128
      %925 = vsyncadd [#allocation6], %s924
      %s927 = sshll.u32 [#allocation10], 4
      %s928 = int_to_ptr.vmem [resolvable:$true] %s927
      %930 = dma.vmem_to_hbm [thread:$0]  %s928, 128, %s5, [#allocation6]
    $region41: #{tpu_custom_call.1} parent=1 // pred_fallthru
      _
    // Predicated region
    $region42: #{tpu_custom_call.1} parent=1 // pred_check
      _
    $region43: #{tpu_custom_call.1} parent=1 // pred_check_branch
      %932 = sbr.rel (0) target = $region45
    $region44: #{tpu_custom_call.1} parent=1 // pred_region
      %933 = dma.done [#allocation6], 128
    $region45: #{tpu_custom_call.1} parent=1 // pred_fallthru
      _
    %934 = vsyncpa [#allocation5], 1
    %935 = vsyncpa [#allocation8], 1
    %936 = vsyncpa [#allocation6], 1

</llo_original>
